<compile_context>
chip_gen: v6e
topology: v6e:2x2x1
jax: 0.10.0
libtpu: 0.0.40
codegen_flags: <defaults>
</compile_context>

<pallas_src>
import functools
import math

import jax
import jax.numpy as jnp
from jax import lax
from jax.experimental import pallas as pl
from jax.experimental.pallas import tpu as pltpu


def _flash_attn_kernel(x_q_ref, x_kv_ref,
                       wq_ref, bq_ref, wk_ref, bk_ref, wv_ref, bv_ref,
                       o_ref,
                       q_scratch, m_scratch, l_scratch, acc_scratch,
                       *, scale, compute_dtype, approx_recip):
    kv_idx = pl.program_id(2)

    # ---- init: runs once per (batch, q-tile) — project Q, zero accumulators ----
    @pl.when(kv_idx == 0)
    def _init():
        q = jnp.dot(x_q_ref[0], wq_ref[...],
                    preferred_element_type=jnp.float32) + bq_ref[...]
        # Fold 1/sqrt(att_dim) into Q once; store in the MXU input dtype.
        q_scratch[...] = (q * scale).astype(compute_dtype)
        m_scratch[...] = jnp.full_like(m_scratch, -jnp.inf)
        l_scratch[...] = jnp.zeros_like(l_scratch)
        acc_scratch[...] = jnp.zeros_like(acc_scratch)

    # ---- per KV tile: project K/V for this tile, online-softmax update ----
    x_kv = x_kv_ref[0]                                               # (tk, E)
    k = (jnp.dot(x_kv, wk_ref[...], preferred_element_type=jnp.float32)
         + bk_ref[...]).astype(compute_dtype)                        # (tk, Ap)
    v = (jnp.dot(x_kv, wv_ref[...], preferred_element_type=jnp.float32)
         + bv_ref[...]).astype(compute_dtype)                        # (tk, Ap)

    # Scores (tq, tk): contract last axes of Q and K — no explicit k.T.
    s = lax.dot_general(q_scratch[...], k,
                        dimension_numbers=(((1,), (1,)), ((), ())),
                        preferred_element_type=jnp.float32)

    m_prev = m_scratch[...]                                          # (tq, 1)
    m_new = jnp.maximum(m_prev, jnp.max(s, axis=-1, keepdims=True))
    alpha = jnp.exp(m_prev - m_new)
    p = jnp.exp(s - m_new)                                           # f32
    l_scratch[...] = alpha * l_scratch[...] + jnp.sum(p, axis=-1, keepdims=True)
    acc_scratch[...] = alpha * acc_scratch[...] + jnp.dot(
        p.astype(compute_dtype), v, preferred_element_type=jnp.float32)
    m_scratch[...] = m_new

    # ---- finalize on the last KV tile ----
    @pl.when(kv_idx == pl.num_programs(2) - 1)
    def _finalize():
        inv_l = pl.reciprocal(l_scratch[...], approx=approx_recip)
        o_ref[0] = (acc_scratch[...] * inv_l).astype(o_ref.dtype)


def _choose_seq_tile(s, max_tile):
    """Largest tile <= max_tile that divides s and is a multiple of 8 (else s)."""
    if s <= max_tile:
        return s
    for t in range(max_tile - max_tile % 8, 7, -8):
        if s % t == 0:
            return t
    return s


def sc_dot_pro_attention(x, wq, bq, wk, bk, wv, bv, *,
                         compute_dtype=jnp.bfloat16,
                         max_q_tile=256, max_kv_tile=256,
                         vmem_limit_bytes=48 * 1024 * 1024):
    """Scaled dot-product attention with fused Q/K/V projections.

    x: (B, S, E); w*: (E, A) pre-transposed nn.Linear weights; b*: (1, A).
    Returns (B, S, A) in x.dtype.
    """
    B, S, E = x.shape
    A = wq.shape[1]
    scale = 1.0 / math.sqrt(A)          # scale by the ORIGINAL att_dim

    # Pad attention dim to a lane-dense multiple of 128.  Padded weight/bias
    # columns are zero -> Q/K padded columns are zero -> scores unchanged; V's
    # padded columns yield zero output columns which are sliced off below.
    A_pad = ((A + 127) // 128) * 128
    pad_a = A_pad - A

    def _pad(arr):
        return jnp.pad(arr, ((0, 0), (0, pad_a))) if pad_a else arr

    # Cast MXU operands once in HBM (halves X/weight DMA traffic for bf16).
    x_c = x.astype(compute_dtype)
    wq_c, wk_c, wv_c = (_pad(w).astype(compute_dtype) for w in (wq, wk, wv))
    bq_c, bk_c, bv_c = (_pad(b).astype(jnp.float32) for b in (bq, bk, bv))

    # Tile sizes: 256 keeps per-step residency well under v7x's 64 MiB VMEM
    # and v5e's scoped limit while staying MXU/lane aligned; bump max_q_tile/
    # max_kv_tile to 512-1024 on v6e (128 MiB VMEM) for large S.
    tq = _choose_seq_tile(S, max_q_tile)
    tk = _choose_seq_tile(S, max_kv_tile)
    n_q, n_kv = S // tq, S // tk

    kernel = functools.partial(
        _flash_attn_kernel, scale=scale, compute_dtype=compute_dtype,
        approx_recip=(compute_dtype != jnp.float32))

    # Constant-index weight/bias specs: Pallas skips re-DMA when the block
    # index does not change between grid steps.
    w_spec = pl.BlockSpec((E, A_pad), lambda b, qi, ki: (0, 0))
    b_spec = pl.BlockSpec((1, A_pad), lambda b, qi, ki: (0, 0))

    flops = 2 * B * S * E * A_pad * 3 + 2 * B * S * S * A_pad * 2
    bytes_accessed = (2 * x_c.size * x_c.dtype.itemsize
                      + 3 * wq_c.size * wq_c.dtype.itemsize
                      + 3 * bq_c.size * 4
                      + B * S * A_pad * jnp.dtype(x.dtype).itemsize)

    out = pl.pallas_call(
        kernel,
        out_shape=jax.ShapeDtypeStruct((B, S, A_pad), x.dtype),
        grid_spec=pltpu.PrefetchScalarGridSpec(
            num_scalar_prefetch=0,
            grid=(B, n_q, n_kv),            # reduction (KV) axis innermost
            in_specs=[
                pl.BlockSpec((1, tq, E), lambda b, qi, ki: (b, qi, 0)),  # X rows for Q
                pl.BlockSpec((1, tk, E), lambda b, qi, ki: (b, ki, 0)),  # X rows for K/V
                w_spec, b_spec,              # Q projection
                w_spec, b_spec,              # K projection
                w_spec, b_spec,              # V projection
            ],
            out_specs=pl.BlockSpec((1, tq, A_pad), lambda b, qi, ki: (b, qi, 0)),
            scratch_shapes=[
                pltpu.VMEM((tq, A_pad), compute_dtype),   # scaled Q tile
                pltpu.VMEM((tq, 1), jnp.float32),         # running max
                pltpu.VMEM((tq, 1), jnp.float32),         # running denominator
                pltpu.VMEM((tq, A_pad), jnp.float32),     # output accumulator
            ],
        ),
        compiler_params=pltpu.CompilerParams(
            dimension_semantics=("parallel", "parallel", "arbitrary"),
            vmem_limit_bytes=vmem_limit_bytes,
        ),
        cost_estimate=pl.CostEstimate(
            flops=flops,
            transcendentals=B * S * S,
            bytes_accessed=bytes_accessed,
        ),
    )(x_c, x_c, wq_c, bq_c, wk_c, bk_c, wv_c, bv_c)

    return out[..., :A] if pad_a else out


def reference(x, wq, bq, wk, bk, wv, bv):
    q = x @ wq + bq
    k = x @ wk + bk
    v = x @ wv + bv
    A = wq.shape[1]
    s = (q @ jnp.swapaxes(k, 1, 2)) / math.sqrt(A)
    w = jax.nn.softmax(s, axis=2)
    return w @ v


if __name__ == "__main__":
    # Small shapes consistent with the module: batch=2, seq=8, embedding_dim=32,
    # att_dim=16.
    B, S, E, A = 2, 8, 32, 16

    key = jax.random.PRNGKey(0)
    kx, kq, kbq, kk, kbk, kvv, kbv = jax.random.split(key, 7)

    x = jax.random.normal(kx, (B, S, E), dtype=jnp.float32)

    # nn.Linear-style uniform init, weights stored pre-transposed as (E, A).
    bound = 1.0 / math.sqrt(E)
    wq = jax.random.uniform(kq, (E, A), jnp.float32, -bound, bound)
    wk = jax.random.uniform(kk, (E, A), jnp.float32, -bound, bound)
    wv = jax.random.uniform(kvv, (E, A), jnp.float32, -bound, bound)
    bq = jax.random.uniform(kbq, (1, A), jnp.float32, -bound, bound)
    bk = jax.random.uniform(kbk, (1, A), jnp.float32, -bound, bound)
    bv = jax.random.uniform(kbv, (1, A), jnp.float32, -bound, bound)

    # Full-precision path (exact reciprocal) and the default bf16 MXU path.
    out_f32 = sc_dot_pro_attention(x, wq, bq, wk, bk, wv, bv,
                                   compute_dtype=jnp.float32)
    out_bf16 = sc_dot_pro_attention(x, wq, bq, wk, bk, wv, bv)
    jax.block_until_ready((out_f32, out_bf16))

    ref = reference(x, wq, bq, wk, bk, wv, bv)
    assert out_f32.shape == (B, S, A)
    assert out_bf16.shape == (B, S, A)
    assert jnp.allclose(out_f32, ref, atol=1e-4, rtol=1e-4), (
        f"f32 max abs diff {jnp.max(jnp.abs(out_f32 - ref))}")
    assert jnp.allclose(out_bf16, ref, atol=3e-2, rtol=3e-2), (
        f"bf16 max abs diff {jnp.max(jnp.abs(out_bf16 - ref))}")

    print("KERNEL_OK")
</pallas_src>

<mosaic_0001>
module attributes {stable_mosaic.version = 11 : i64} {
  func.func @_flash_attn_kernel(%arg0: i32, %arg1: i32, %arg2: i32, %arg3: memref<1x8x32xf32, #tpu.memory_space<vmem>>, %arg4: memref<1x8x32xf32, #tpu.memory_space<vmem>>, %arg5: memref<32x128xf32, #tpu.memory_space<vmem>>, %arg6: memref<1x128xf32, #tpu.memory_space<vmem>>, %arg7: memref<32x128xf32, #tpu.memory_space<vmem>>, %arg8: memref<1x128xf32, #tpu.memory_space<vmem>>, %arg9: memref<32x128xf32, #tpu.memory_space<vmem>>, %arg10: memref<1x128xf32, #tpu.memory_space<vmem>>, %arg11: memref<1x8x128xf32, #tpu.memory_space<vmem>>, %arg12: memref<8x128xf32, #tpu.memory_space<vmem>>, %arg13: memref<8x1xf32, #tpu.memory_space<vmem>>, %arg14: memref<8x1xf32, #tpu.memory_space<vmem>>, %arg15: memref<8x128xf32, #tpu.memory_space<vmem>>) attributes {dimension_semantics = [#tpu.dimension_semantics<parallel>, #tpu.dimension_semantics<parallel>, #tpu.dimension_semantics<arbitrary>], iteration_bounds = array<i64: 2, 1, 1>, scalar_prefetch = 0 : i64, scratch_operands = 4 : i64, tpu.core_type = #tpu.core_type<tc>, window_params = [{transform_indices = @transform_0, window_bounds = array<i64: 1, 8, 32>}, {transform_indices = @transform_1, window_bounds = array<i64: 1, 8, 32>}, {pipeline_mode = #tpu.pipeline_mode<synchronous>, transform_indices = @transform_2, window_bounds = array<i64: 32, 128>}, {pipeline_mode = #tpu.pipeline_mode<synchronous>, transform_indices = @transform_3, window_bounds = array<i64: 1, 128>}, {pipeline_mode = #tpu.pipeline_mode<synchronous>, transform_indices = @transform_4, window_bounds = array<i64: 32, 128>}, {pipeline_mode = #tpu.pipeline_mode<synchronous>, transform_indices = @transform_5, window_bounds = array<i64: 1, 128>}, {pipeline_mode = #tpu.pipeline_mode<synchronous>, transform_indices = @transform_6, window_bounds = array<i64: 32, 128>}, {pipeline_mode = #tpu.pipeline_mode<synchronous>, transform_indices = @transform_7, window_bounds = array<i64: 1, 128>}, {transform_indices = @transform_8, window_bounds = array<i64: 1, 8, 128>}]} {
    %c0_i32 = arith.constant 0 : i32
    %0 = arith.cmpi eq, %arg2, %c0_i32 : i32
    %1 = arith.extui %0 : i1 to i32
    %c0_i32_0 = arith.constant 0 : i32
    %2 = arith.cmpi ne, %1, %c0_i32_0 : i32
    scf.if %2 {
      %c0_32 = arith.constant 0 : index
      %c0_33 = arith.constant 0 : index
      %c0_34 = arith.constant 0 : index
      %42 = vector.load %arg3[%c0_32, %c0_33, %c0_34] : memref<1x8x32xf32, #tpu.memory_space<vmem>>, vector<1x8x32xf32>
      %43 = vector.shape_cast %42 : vector<1x8x32xf32> to vector<8x32xf32>
      %c0_35 = arith.constant 0 : index
      %c0_36 = arith.constant 0 : index
      %44 = vector.load %arg5[%c0_35, %c0_36] : memref<32x128xf32, #tpu.memory_space<vmem>>, vector<32x128xf32>
      %cst_37 = arith.constant dense<0.000000e+00> : vector<8x128xf32>
      %45 = tpu.matmul %43, %44, %cst_37 {dimension_numbers = #tpu.dot_dimension_numbers<[1], [0], [0], [1], [0, 0, 1, 1], [], []>} : vector<8x32xf32>, vector<32x128xf32>, vector<8x128xf32> -> vector<8x128xf32>
      %c0_38 = arith.constant 0 : index
      %c0_39 = arith.constant 0 : index
      %46 = vector.load %arg6[%c0_38, %c0_39] : memref<1x128xf32, #tpu.memory_space<vmem>>, vector<1x128xf32>
      %47 = vector.broadcast %46 : vector<1x128xf32> to vector<8x128xf32>
      %48 = arith.addf %45, %47 : vector<8x128xf32>
      %cst_40 = arith.constant 2.500000e-01 : f32
      %49 = vector.broadcast %cst_40 : f32 to vector<8x128xf32>
      %50 = arith.mulf %48, %49 : vector<8x128xf32>
      %c0_41 = arith.constant 0 : index
      %c0_42 = arith.constant 0 : index
      %51 = vector.load %arg12[%c0_41, %c0_42] : memref<8x128xf32, #tpu.memory_space<vmem>>, vector<8x128xf32>
      tpu.vector_store %arg12[%c0_41, %c0_42], %50 {strides = array<i32>} : memref<8x128xf32, #tpu.memory_space<vmem>>, vector<8x128xf32>,
      %cst_43 = arith.constant 0xFF800000 : f32
      %52 = vector.broadcast %cst_43 : f32 to vector<8x1xf32>
      %c0_44 = arith.constant 0 : index
      %c0_45 = arith.constant 0 : index
      %53 = vector.load %arg13[%c0_44, %c0_45] : memref<8x1xf32, #tpu.memory_space<vmem>>, vector<8x1xf32>
      tpu.vector_store %arg13[%c0_44, %c0_45], %52 {strides = array<i32>} : memref<8x1xf32, #tpu.memory_space<vmem>>, vector<8x1xf32>,
      %cst_46 = arith.constant 0.000000e+00 : f32
      %54 = vector.broadcast %cst_46 : f32 to vector<8x1xf32>
      %c0_47 = arith.constant 0 : index
      %c0_48 = arith.constant 0 : index
      %55 = vector.load %arg14[%c0_47, %c0_48] : memref<8x1xf32, #tpu.memory_space<vmem>>, vector<8x1xf32>
      tpu.vector_store %arg14[%c0_47, %c0_48], %54 {strides = array<i32>} : memref<8x1xf32, #tpu.memory_space<vmem>>, vector<8x1xf32>,
      %cst_49 = arith.constant 0.000000e+00 : f32
      %56 = vector.broadcast %cst_49 : f32 to vector<8x128xf32>
      %c0_50 = arith.constant 0 : index
      %c0_51 = arith.constant 0 : index
      %57 = vector.load %arg15[%c0_50, %c0_51] : memref<8x128xf32, #tpu.memory_space<vmem>>, vector<8x128xf32>
      tpu.vector_store %arg15[%c0_50, %c0_51], %56 {strides = array<i32>} : memref<8x128xf32, #tpu.memory_space<vmem>>, vector<8x128xf32>,
    } else {
    }
    %c0 = arith.constant 0 : index
    %c0_1 = arith.constant 0 : index
    %c0_2 = arith.constant 0 : index
    %3 = vector.load %arg4[%c0, %c0_1, %c0_2] : memref<1x8x32xf32, #tpu.memory_space<vmem>>, vector<1x8x32xf32>
    %4 = vector.shape_cast %3 : vector<1x8x32xf32> to vector<8x32xf32>
    %c0_3 = arith.constant 0 : index
    %c0_4 = arith.constant 0 : index
    %5 = vector.load %arg7[%c0_3, %c0_4] : memref<32x128xf32, #tpu.memory_space<vmem>>, vector<32x128xf32>
    %cst = arith.constant dense<0.000000e+00> : vector<8x128xf32>
    %6 = tpu.matmul %4, %5, %cst {dimension_numbers = #tpu.dot_dimension_numbers<[1], [0], [0], [1], [0, 0, 1, 1], [], []>} : vector<8x32xf32>, vector<32x128xf32>, vector<8x128xf32> -> vector<8x128xf32>
    %c0_5 = arith.constant 0 : index
    %c0_6 = arith.constant 0 : index
    %7 = vector.load %arg8[%c0_5, %c0_6] : memref<1x128xf32, #tpu.memory_space<vmem>>, vector<1x128xf32>
    %8 = vector.broadcast %7 : vector<1x128xf32> to vector<8x128xf32>
    %9 = arith.addf %6, %8 : vector<8x128xf32>
    %c0_7 = arith.constant 0 : index
    %c0_8 = arith.constant 0 : index
    %10 = vector.load %arg9[%c0_7, %c0_8] : memref<32x128xf32, #tpu.memory_space<vmem>>, vector<32x128xf32>
    %cst_9 = arith.constant dense<0.000000e+00> : vector<8x128xf32>
    %11 = tpu.matmul %4, %10, %cst_9 {dimension_numbers = #tpu.dot_dimension_numbers<[1], [0], [0], [1], [0, 0, 1, 1], [], []>} : vector<8x32xf32>, vector<32x128xf32>, vector<8x128xf32> -> vector<8x128xf32>
    %c0_10 = arith.constant 0 : index
    %c0_11 = arith.constant 0 : index
    %12 = vector.load %arg10[%c0_10, %c0_11] : memref<1x128xf32, #tpu.memory_space<vmem>>, vector<1x128xf32>
    %13 = vector.broadcast %12 : vector<1x128xf32> to vector<8x128xf32>
    %14 = arith.addf %11, %13 : vector<8x128xf32>
    %c0_12 = arith.constant 0 : index
    %c0_13 = arith.constant 0 : index
    %15 = vector.load %arg12[%c0_12, %c0_13] : memref<8x128xf32, #tpu.memory_space<vmem>>, vector<8x128xf32>
    %cst_14 = arith.constant dense<0.000000e+00> : vector<8x8xf32>
    %16 = tpu.matmul %15, %9, %cst_14 {dimension_numbers = #tpu.dot_dimension_numbers<[1], [1], [0], [0], [0, 0, 1, 0], [], []>} : vector<8x128xf32>, vector<8x128xf32>, vector<8x8xf32> -> vector<8x8xf32>
    %c0_15 = arith.constant 0 : index
    %c0_16 = arith.constant 0 : index
    %17 = vector.load %arg13[%c0_15, %c0_16] : memref<8x1xf32, #tpu.memory_space<vmem>>, vector<8x1xf32>
    %cst_17 = arith.constant dense<0xFF800000> : vector<8xf32>
    %18 = vector.multi_reduction <maximumf>, %16, %cst_17 [1] : vector<8x8xf32> to vector<8xf32>
    %19 = vector.shape_cast %18 : vector<8xf32> to vector<8x1xf32>
    %20 = arith.maximumf %17, %19 : vector<8x1xf32>
    %21 = arith.subf %17, %20 : vector<8x1xf32>
    %22 = math.exp %21 : vector<8x1xf32>
    %23 = vector.broadcast %20 : vector<8x1xf32> to vector<8x8xf32>
    %24 = arith.subf %16, %23 : vector<8x8xf32>
    %25 = math.exp %24 : vector<8x8xf32>
    %c0_18 = arith.constant 0 : index
    %c0_19 = arith.constant 0 : index
    %26 = vector.load %arg14[%c0_18, %c0_19] : memref<8x1xf32, #tpu.memory_space<vmem>>, vector<8x1xf32>
    %27 = arith.mulf %22, %26 : vector<8x1xf32>
    %cst_20 = arith.constant dense<0.000000e+00> : vector<8xf32>
    %28 = vector.multi_reduction <add>, %25, %cst_20 [1] : vector<8x8xf32> to vector<8xf32>
    %29 = vector.shape_cast %28 : vector<8xf32> to vector<8x1xf32>
    %30 = arith.addf %27, %29 : vector<8x1xf32>
    %c0_21 = arith.constant 0 : index
    %c0_22 = arith.constant 0 : index
    %31 = vector.load %arg14[%c0_21, %c0_22] : memref<8x1xf32, #tpu.memory_space<vmem>>, vector<8x1xf32>
    tpu.vector_store %arg14[%c0_21, %c0_22], %30 {strides = array<i32>} : memref<8x1xf32, #tpu.memory_space<vmem>>, vector<8x1xf32>,
    %c0_23 = arith.constant 0 : index
    %c0_24 = arith.constant 0 : index
    %32 = vector.load %arg15[%c0_23, %c0_24] : memref<8x128xf32, #tpu.memory_space<vmem>>, vector<8x128xf32>
    %33 = vector.broadcast %22 : vector<8x1xf32> to vector<8x128xf32>
    %34 = arith.mulf %33, %32 : vector<8x128xf32>
    %cst_25 = arith.constant dense<0.000000e+00> : vector<8x128xf32>
    %35 = tpu.matmul %25, %14, %cst_25 {dimension_numbers = #tpu.dot_dimension_numbers<[1], [0], [0], [1], [0, 0, 1, 1], [], []>} : vector<8x8xf32>, vector<8x128xf32>, vector<8x128xf32> -> vector<8x128xf32>
    %36 = arith.addf %34, %35 : vector<8x128xf32>
    %c0_26 = arith.constant 0 : index
    %c0_27 = arith.constant 0 : index
    %37 = vector.load %arg15[%c0_26, %c0_27] : memref<8x128xf32, #tpu.memory_space<vmem>>, vector<8x128xf32>
    tpu.vector_store %arg15[%c0_26, %c0_27], %36 {strides = array<i32>} : memref<8x128xf32, #tpu.memory_space<vmem>>, vector<8x128xf32>,
    %c0_28 = arith.constant 0 : index
    %c0_29 = arith.constant 0 : index
    %38 = vector.load %arg13[%c0_28, %c0_29] : memref<8x1xf32, #tpu.memory_space<vmem>>, vector<8x1xf32>
    tpu.vector_store %arg13[%c0_28, %c0_29], %20 {strides = array<i32>} : memref<8x1xf32, #tpu.memory_space<vmem>>, vector<8x1xf32>,
    %c0_i32_30 = arith.constant 0 : i32
    %39 = arith.cmpi eq, %arg2, %c0_i32_30 : i32
    %40 = arith.extui %39 : i1 to i32
    %c0_i32_31 = arith.constant 0 : i32
    %41 = arith.cmpi ne, %40, %c0_i32_31 : i32
    scf.if %41 {
      %c0_32 = arith.constant 0 : index
      %c0_33 = arith.constant 0 : index
      %42 = vector.load %arg14[%c0_32, %c0_33] : memref<8x1xf32, #tpu.memory_space<vmem>>, vector<8x1xf32>
      %43 = tpu.reciprocal %42 : vector<8x1xf32> -> vector<8x1xf32>
      %c0_34 = arith.constant 0 : index
      %c0_35 = arith.constant 0 : index
      %44 = vector.load %arg15[%c0_34, %c0_35] : memref<8x128xf32, #tpu.memory_space<vmem>>, vector<8x128xf32>
      %45 = vector.broadcast %43 : vector<8x1xf32> to vector<8x128xf32>
      %46 = arith.mulf %44, %45 : vector<8x128xf32>
      %c0_36 = arith.constant 0 : index
      %c0_37 = arith.constant 0 : index
      %c0_38 = arith.constant 0 : index
      %47 = vector.load %arg11[%c0_36, %c0_37, %c0_38] : memref<1x8x128xf32, #tpu.memory_space<vmem>>, vector<1x8x128xf32>
      %48 = vector.shape_cast %47 : vector<1x8x128xf32> to vector<8x128xf32>
      %49 = vector.shape_cast %46 : vector<8x128xf32> to vector<1x8x128xf32>
      tpu.vector_store %arg11[%c0_36, %c0_37, %c0_38], %49 {strides = array<i32>} : memref<1x8x128xf32, #tpu.memory_space<vmem>>, vector<1x8x128xf32>,
    } else {
    }
    return
  }
  func.func @transform_0(%arg0: i32, %arg1: i32, %arg2: i32) -> (i32, i32, i32) {
    %c0_i32 = arith.constant 0 : i32
    %c0_i32_0 = arith.constant 0 : i32
    return %arg0, %arg1, %c0_i32 : i32, i32, i32
  }
  func.func @transform_1(%arg0: i32, %arg1: i32, %arg2: i32) -> (i32, i32, i32) {
    %c0_i32 = arith.constant 0 : i32
    %c0_i32_0 = arith.constant 0 : i32
    return %arg0, %arg2, %c0_i32 : i32, i32, i32
  }
  func.func @transform_2(%arg0: i32, %arg1: i32, %arg2: i32) -> (i32, i32) {
    %c0_i32 = arith.constant 0 : i32
    %c0_i32_0 = arith.constant 0 : i32
    %c0_i32_1 = arith.constant 0 : i32
    return %c0_i32, %c0_i32_0 : i32, i32
  }
  func.func @transform_3(%arg0: i32, %arg1: i32, %arg2: i32) -> (i32, i32) {
    %c0_i32 = arith.constant 0 : i32
    %c0_i32_0 = arith.constant 0 : i32
    %c0_i32_1 = arith.constant 0 : i32
    return %c0_i32, %c0_i32_0 : i32, i32
  }
  func.func @transform_4(%arg0: i32, %arg1: i32, %arg2: i32) -> (i32, i32) {
    %c0_i32 = arith.constant 0 : i32
    %c0_i32_0 = arith.constant 0 : i32
    %c0_i32_1 = arith.constant 0 : i32
    return %c0_i32, %c0_i32_0 : i32, i32
  }
  func.func @transform_5(%arg0: i32, %arg1: i32, %arg2: i32) -> (i32, i32) {
    %c0_i32 = arith.constant 0 : i32
    %c0_i32_0 = arith.constant 0 : i32
    %c0_i32_1 = arith.constant 0 : i32
    return %c0_i32, %c0_i32_0 : i32, i32
  }
  func.func @transform_6(%arg0: i32, %arg1: i32, %arg2: i32) -> (i32, i32) {
    %c0_i32 = arith.constant 0 : i32
    %c0_i32_0 = arith.constant 0 : i32
    %c0_i32_1 = arith.constant 0 : i32
    return %c0_i32, %c0_i32_0 : i32, i32
  }
  func.func @transform_7(%arg0: i32, %arg1: i32, %arg2: i32) -> (i32, i32) {
    %c0_i32 = arith.constant 0 : i32
    %c0_i32_0 = arith.constant 0 : i32
    %c0_i32_1 = arith.constant 0 : i32
    return %c0_i32, %c0_i32_0 : i32, i32
  }
  func.func @transform_8(%arg0: i32, %arg1: i32, %arg2: i32) -> (i32, i32, i32) {
    %c0_i32 = arith.constant 0 : i32
    %c0_i32_0 = arith.constant 0 : i32
    return %arg0, %arg1, %c0_i32 : i32, i32, i32
  }
}

</mosaic_0001>

<llo_original>
// kernel: tpu_custom_call.1
$region0: #{tpu_custom_call.1}
  #allocation0 [shape = 'u32[]', space=smem, size = 0x4, offset = 0x4, fixed_abs, tag = 'smem constant byte address 0x4 - core index']
  #allocation1 [shape = 'u32[144,128]{1,0:T(1,128)}', space=vmem, size = 0x12000, scoped, tag = 'internal scratch']
  #allocation2 [shape = 'f32[8,128]{1,0:T(8,128)}', space=vmem, size = 0x1000, scoped, tag = 'scratch operand']
  #allocation3 [shape = 'f32[8,1]{1,0:T(8,128)}', space=vmem, size = 0x1000, scoped, tag = 'scratch operand']
  #allocation4 [shape = 'f32[8,1]{1,0:T(8,128)}', space=vmem, size = 0x1000, scoped, tag = 'scratch operand']
  #allocation5 [shape = 'f32[8,128]{1,0:T(8,128)}', space=vmem, size = 0x1000, scoped, tag = 'scratch operand']
  %s0 = inlined_call_operand.hbm [shape: f32[2,8,32], index: 0, kind: input, shape index: {}]
  %s1 = inlined_call_operand.hbm [shape: f32[2,8,32], index: 1, kind: input, shape index: {}]
  %s2 = inlined_call_operand.hbm [shape: f32[32,128], index: 2, kind: input, shape index: {}]
  %s3 = inlined_call_operand.vmem [shape: f32[1,128], index: 3, kind: input, shape index: {}]
  %s4 = inlined_call_operand.hbm [shape: f32[32,128], index: 4, kind: input, shape index: {}]
  %s5 = inlined_call_operand.vmem [shape: f32[1,128], index: 5, kind: input, shape index: {}]
  %s6 = inlined_call_operand.hbm [shape: f32[32,128], index: 6, kind: input, shape index: {}]
  %s7 = inlined_call_operand.vmem [shape: f32[1,128], index: 7, kind: input, shape index: {}]
  %s8 = inlined_call_operand.hbm [shape: f32[2,8,128], index: 8, kind: output, shape index: {}]
  %s9 = sld [smem:[#allocation0]]
  $region93: #{tpu_custom_call.1} parent=0
    _
  %s11 = ssub.s32 1, %s9
  %s12 = scalar_select 0, %s11, %s9
  $region1: #{tpu_custom_call.1} parent=0
    #allocation6 [shape = 'u8[8192]{0}', space=vmem, size = 0x2000, scoped, tag = 'input window, operand 0']
    #allocation7 [shape = 's32[2]{0}', space=sflag, size = 0x8, scoped, tag = 'scoped memory for tpu_custom_call.1']
    #allocation8 [shape = 's32[2]{0}', space=sflag, size = 0x8, scoped, tag = 'scoped memory for tpu_custom_call.1']
    #allocation9 [shape = 'u8[8192]{0}', space=vmem, size = 0x2000, scoped, tag = 'input window, operand 1']
    #allocation10 [shape = 's32[2]{0}', space=sflag, size = 0x8, scoped, tag = 'scoped memory for tpu_custom_call.1']
    #allocation11 [shape = 'u8[16384]{0}', space=vmem, size = 0x4000, scoped, tag = 'input window, operand 2, single buffered']
    #allocation12 [shape = 'u8[16384]{0}', space=vmem, size = 0x4000, scoped, tag = 'input window, operand 4, single buffered']
    #allocation13 [shape = 's32[1]{0}', space=sflag, size = 0x4, scoped, tag = 'scoped memory for tpu_custom_call.1']
    #allocation14 [shape = 'u8[16384]{0}', space=vmem, size = 0x4000, scoped, tag = 'input window, operand 6, single buffered']
    #allocation15 [shape = 'u8[8192]{0}', space=vmem, size = 0x2000, scoped, tag = 'output window, operand 0']
    %13 = vsyncpa [#allocation7], 0
    %s14 = scalar_lea.sflag [#allocation7], 1
    %15 = vsyncpa %s14, 0
    %16 = vsyncpa [#allocation10], 0
    %s17 = scalar_lea.sflag [#allocation10], 1
    %18 = vsyncpa %s17, 0
    %19 = vsyncpa [#allocation13], 0
    %20 = vsyncpa [#allocation8], 0
    %s21 = scalar_lea.sflag [#allocation8], 1
    %22 = vsyncpa %s21, 0
    loop: start=0, step=1, limit=4
    $region2: #{tpu_custom_call.1} parent=1 // loop_pre_header
      _
    $region3: #{tpu_custom_call.1} parent=1 // loop_header
      %s24 = sphi 0, %s28
      %p25 = scmp.ge.s32.totalorder %s24, 4
      %s31 = sphi 0, %s50
      %s32 = sphi 0, %s46
      %s33 = sphi 0, %s42
      %s34 = sphi 0, %s31
      %s35 = sphi 0, %s32
      %s36 = sphi 0, %s33
      %s37 = sphi 0, %s34
      %s38 = sphi 0, %s35
      %s39 = sphi 0, %s36
      %s55 = sphi 0, %s57
      %s58 = sphi 0, %s55
      %s59 = sphi 0, %s58
      %s75 = sphi 0, %s59
      %s83 = sphi 0, %s85
      %s86 = sphi 0, %s83
      %s87 = sphi 0, %s86
      %s103 = sphi 0, %s87
      %s107 = sphi 0, %s107
      %s109 = sphi 0, %s107
      %s110 = sphi 0, %s109
      %s124 = sphi 0, %s110
      %s128 = sphi 0, %s128
      %s130 = sphi 0, %s128
      %s131 = sphi 0, %s130
      %s145 = sphi 0, %s131
      %s149 = sphi 0, %s149
      %s151 = sphi 0, %s149
      %s152 = sphi 0, %s151
      %s166 = sphi 0, %s152
      %s170 = sphi 0, %s170
      %s172 = sphi 0, %s170
      %s173 = sphi 0, %s172
      %s187 = sphi 0, %s173
      %s191 = sphi 0, %s191
      %s193 = sphi 0, %s191
      %s194 = sphi 0, %s193
      %s208 = sphi 0, %s194
      %s212 = sphi 0, %s212
      %s214 = sphi 0, %s212
      %s215 = sphi 0, %s214
      %s229 = sphi 0, %s215
      %s237 = sphi 0, %s239
      %s240 = sphi 0, %s237
      %s241 = sphi 0, %s240
      %s257 = sphi 0, %s241
    $region4: #{tpu_custom_call.1} parent=1 // loop_header_branch
      %27 = sbr.rel (%p25) target = $region8
    $region5: #{tpu_custom_call.1} parent=1 // loop_body
      %s29 = ssub.s32 %s24, 1
      %s30 = ssub.s32 %s24, 2
      %s40 = sadd.s32 1, %s33
      %p41 = scmp.ge.s32.totalorder %s40, 1
      %s42 = scalar_select %p41, 0, %s40
      %s43 = sadd.s32 1, %s32
      %s44 = scalar_select %p41, %s43, %s32
      %p45 = scmp.ge.s32.totalorder %s44, 1
      %s46 = scalar_select %p45, 0, %s44
      %s47 = sadd.s32 1, %s31
      %s48 = scalar_select %p45, %s47, %s31
      %p49 = scmp.ge.s32.totalorder %s48, 2
      %s50 = scalar_select %p49, 0, %s48
      %s51 = ssub.s32 %s31, %s50
      %s52 = ssub.s32 %s32, %s46
      %s53 = sor.u32 %s51, %s52
      %p54 = scmp.eq.s32.totalorder %s53, 0
      %s56 = sadd.s32 %s55, 1
      %s57 = scalar_select %p54, %s55, %s56
      %p60 = pneg %p54
      %p61 = scmp.eq.s32.totalorder %s24, 1
      %p62 = por %p60, %p61
      %p63 = scmp.ne.s32.totalorder %s55, %s58
      %p64 = scmp.eq.s32.totalorder %s24, 0
      %p65 = por %p63, %p64
      %p66 = scmp.ne.s32.totalorder %s55, %s58
      %p67 = scmp.eq.s32.totalorder %s29, 1
      %p68 = por %p66, %p67
      %p69 = scmp.ne.s32.totalorder %s58, %s59
      %p70 = scmp.eq.s32.totalorder %s29, 0
      %p71 = por %p69, %p70
      %p72 = scmp.ne.s32.totalorder %s58, %s59
      %p73 = scmp.eq.s32.totalorder %s30, 1
      %p74 = por %p72, %p73
      %p76 = scmp.ne.s32.totalorder %s59, %s75
      %p77 = scmp.eq.s32.totalorder %s30, 0
      %p78 = por %p76, %p77
      %s79 = ssub.s32 %s31, %s50
      %s80 = ssub.s32 %s33, %s42
      %s81 = sor.u32 %s79, %s80
      %p82 = scmp.eq.s32.totalorder %s81, 0
      %s84 = sadd.s32 %s83, 1
      %s85 = scalar_select %p82, %s83, %s84
      %p88 = pneg %p82
      %p89 = scmp.eq.s32.totalorder %s24, 1
      %p90 = por %p88, %p89
      %p91 = scmp.ne.s32.totalorder %s83, %s86
      %p92 = scmp.eq.s32.totalorder %s24, 0
      %p93 = por %p91, %p92
      %p94 = scmp.ne.s32.totalorder %s83, %s86
      %p95 = scmp.eq.s32.totalorder %s29, 1
      %p96 = por %p94, %p95
      %p97 = scmp.ne.s32.totalorder %s86, %s87
      %p98 = scmp.eq.s32.totalorder %s29, 0
      %p99 = por %p97, %p98
      %p100 = scmp.ne.s32.totalorder %s86, %s87
      %p101 = scmp.eq.s32.totalorder %s30, 1
      %p102 = por %p100, %p101
      %p104 = scmp.ne.s32.totalorder %s87, %s103
      %p105 = scmp.eq.s32.totalorder %s30, 0
      %p106 = por %p104, %p105
      %s108 = sadd.s32 %s107, 1
      %p111 = scmp.eq.s32.totalorder %s24, 1
      %p112 = scmp.ne.s32.totalorder %s107, %s109
      %p113 = scmp.eq.s32.totalorder %s24, 0
      %p114 = por %p112, %p113
      %p115 = scmp.ne.s32.totalorder %s107, %s109
      %p116 = scmp.eq.s32.totalorder %s29, 1
      %p117 = por %p115, %p116
      %p118 = scmp.ne.s32.totalorder %s109, %s110
      %p119 = scmp.eq.s32.totalorder %s29, 0
      %p120 = por %p118, %p119
      %p121 = scmp.ne.s32.totalorder %s109, %s110
      %p122 = scmp.eq.s32.totalorder %s30, 1
      %p123 = por %p121, %p122
      %p125 = scmp.ne.s32.totalorder %s110, %s124
      %p126 = scmp.eq.s32.totalorder %s30, 0
      %p127 = por %p125, %p126
      %s129 = sadd.s32 %s128, 1
      %p132 = scmp.eq.s32.totalorder %s24, 1
      %p133 = scmp.ne.s32.totalorder %s128, %s130
      %p134 = scmp.eq.s32.totalorder %s24, 0
      %p135 = por %p133, %p134
      %p136 = scmp.ne.s32.totalorder %s128, %s130
      %p137 = scmp.eq.s32.totalorder %s29, 1
      %p138 = por %p136, %p137
      %p139 = scmp.ne.s32.totalorder %s130, %s131
      %p140 = scmp.eq.s32.totalorder %s29, 0
      %p141 = por %p139, %p140
      %p142 = scmp.ne.s32.totalorder %s130, %s131
      %p143 = scmp.eq.s32.totalorder %s30, 1
      %p144 = por %p142, %p143
      %p146 = scmp.ne.s32.totalorder %s131, %s145
      %p147 = scmp.eq.s32.totalorder %s30, 0
      %p148 = por %p146, %p147
      %s150 = sadd.s32 %s149, 1
      %p153 = scmp.eq.s32.totalorder %s24, 1
      %p154 = scmp.ne.s32.totalorder %s149, %s151
      %p155 = scmp.eq.s32.totalorder %s24, 0
      %p156 = por %p154, %p155
      %p157 = scmp.ne.s32.totalorder %s149, %s151
      %p158 = scmp.eq.s32.totalorder %s29, 1
      %p159 = por %p157, %p158
      %p160 = scmp.ne.s32.totalorder %s151, %s152
      %p161 = scmp.eq.s32.totalorder %s29, 0
      %p162 = por %p160, %p161
      %p163 = scmp.ne.s32.totalorder %s151, %s152
      %p164 = scmp.eq.s32.totalorder %s30, 1
      %p165 = por %p163, %p164
      %p167 = scmp.ne.s32.totalorder %s152, %s166
      %p168 = scmp.eq.s32.totalorder %s30, 0
      %p169 = por %p167, %p168
      %s171 = sadd.s32 %s170, 1
      %p174 = scmp.eq.s32.totalorder %s24, 1
      %p175 = scmp.ne.s32.totalorder %s170, %s172
      %p176 = scmp.eq.s32.totalorder %s24, 0
      %p177 = por %p175, %p176
      %p178 = scmp.ne.s32.totalorder %s170, %s172
      %p179 = scmp.eq.s32.totalorder %s29, 1
      %p180 = por %p178, %p179
      %p181 = scmp.ne.s32.totalorder %s172, %s173
      %p182 = scmp.eq.s32.totalorder %s29, 0
      %p183 = por %p181, %p182
      %p184 = scmp.ne.s32.totalorder %s172, %s173
      %p185 = scmp.eq.s32.totalorder %s30, 1
      %p186 = por %p184, %p185
      %p188 = scmp.ne.s32.totalorder %s173, %s187
      %p189 = scmp.eq.s32.totalorder %s30, 0
      %p190 = por %p188, %p189
      %s192 = sadd.s32 %s191, 1
      %p195 = scmp.eq.s32.totalorder %s24, 1
      %p196 = scmp.ne.s32.totalorder %s191, %s193
      %p197 = scmp.eq.s32.totalorder %s24, 0
      %p198 = por %p196, %p197
      %p199 = scmp.ne.s32.totalorder %s191, %s193
      %p200 = scmp.eq.s32.totalorder %s29, 1
      %p201 = por %p199, %p200
      %p202 = scmp.ne.s32.totalorder %s193, %s194
      %p203 = scmp.eq.s32.totalorder %s29, 0
      %p204 = por %p202, %p203
      %p205 = scmp.ne.s32.totalorder %s193, %s194
      %p206 = scmp.eq.s32.totalorder %s30, 1
      %p207 = por %p205, %p206
      %p209 = scmp.ne.s32.totalorder %s194, %s208
      %p210 = scmp.eq.s32.totalorder %s30, 0
      %p211 = por %p209, %p210
      %s213 = sadd.s32 %s212, 1
      %p216 = scmp.eq.s32.totalorder %s24, 1
      %p217 = scmp.ne.s32.totalorder %s212, %s214
      %p218 = scmp.eq.s32.totalorder %s24, 0
      %p219 = por %p217, %p218
      %p220 = scmp.ne.s32.totalorder %s212, %s214
      %p221 = scmp.eq.s32.totalorder %s29, 1
      %p222 = por %p220, %p221
      %p223 = scmp.ne.s32.totalorder %s214, %s215
      %p224 = scmp.eq.s32.totalorder %s29, 0
      %p225 = por %p223, %p224
      %p226 = scmp.ne.s32.totalorder %s214, %s215
      %p227 = scmp.eq.s32.totalorder %s30, 1
      %p228 = por %p226, %p227
      %p230 = scmp.ne.s32.totalorder %s215, %s229
      %p231 = scmp.eq.s32.totalorder %s30, 0
      %p232 = por %p230, %p231
      %s233 = ssub.s32 %s31, %s50
      %s234 = ssub.s32 %s32, %s46
      %s235 = sor.u32 %s233, %s234
      %p236 = scmp.eq.s32.totalorder %s235, 0
      %s238 = sadd.s32 %s237, 1
      %s239 = scalar_select %p236, %s237, %s238
      %p242 = pneg %p236
      %p243 = scmp.eq.s32.totalorder %s24, 1
      %p244 = por %p242, %p243
      %p245 = scmp.ne.s32.totalorder %s237, %s240
      %p246 = scmp.eq.s32.totalorder %s24, 0
      %p247 = por %p245, %p246
      %p248 = scmp.ne.s32.totalorder %s237, %s240
      %p249 = scmp.eq.s32.totalorder %s29, 1
      %p250 = por %p248, %p249
      %p251 = scmp.ne.s32.totalorder %s240, %s241
      %p252 = scmp.eq.s32.totalorder %s29, 0
      %p253 = por %p251, %p252
      %p254 = scmp.ne.s32.totalorder %s240, %s241
      %p255 = scmp.eq.s32.totalorder %s30, 1
      %p256 = por %p254, %p255
      %p258 = scmp.ne.s32.totalorder %s241, %s257
      %p259 = scmp.eq.s32.totalorder %s30, 0
      %p260 = por %p258, %p259
      %p261 = scmp.le.s32.totalorder 1, %s24
      %p262 = scmp.lt.s32.totalorder %s24, 3
      %p263 = pnand %p261, %p262
      %p264 = pneg %p263
      // Predicated region
      $region9: #{tpu_custom_call.1} parent=5 // pred_check
        _
      $region10: #{tpu_custom_call.1} parent=5 // pred_check_branch
        %266 = sbr.rel (%p263) target = $region12
      $region11: #{tpu_custom_call.1} parent=5 // pred_region
        %s267 = ssub.s32 %s24, 1
        // Predicated region
        $region13: #{tpu_custom_call.1} parent=11 // pred_check
          %p268 = pneg %p120
        $region14: #{tpu_custom_call.1} parent=11 // pred_check_branch
          %270 = sbr.rel (%p268) target = $region16
        $region15: #{tpu_custom_call.1} parent=11 // pred_region
          %s272 = ssub.s32 512, 512
          %273 = vsyncadd [#allocation10], %s272
          %s274 = sshll.u32 [#allocation11], 4
          %s275 = int_to_ptr.vmem [resolvable:$true] %s274
          %280 = dma.hbm_to_vmem [thread:$0]  %s2, 512, %s275, [#allocation10], 128, 128, 8
        $region16: #{tpu_custom_call.1} parent=11 // pred_fallthru
          _
        // Predicated region
        $region17: #{tpu_custom_call.1} parent=11 // pred_check
          %p281 = pneg %p141
        $region18: #{tpu_custom_call.1} parent=11 // pred_check_branch
          %283 = sbr.rel (%p281) target = $region20
        $region19: #{tpu_custom_call.1} parent=11 // pred_region
          _
        $region20: #{tpu_custom_call.1} parent=11 // pred_fallthru
          _
        // Predicated region
        $region21: #{tpu_custom_call.1} parent=11 // pred_check
          %p284 = pneg %p162
        $region22: #{tpu_custom_call.1} parent=11 // pred_check_branch
          %286 = sbr.rel (%p284) target = $region24
        $region23: #{tpu_custom_call.1} parent=11 // pred_region
          %s288 = ssub.s32 512, 512
          %289 = vsyncadd [#allocation13], %s288
          %s290 = sshll.u32 [#allocation12], 4
          %s291 = int_to_ptr.vmem [resolvable:$true] %s290
          %296 = dma.hbm_to_vmem [thread:$0]  %s4, 512, %s291, [#allocation13], 128, 128, 8
        $region24: #{tpu_custom_call.1} parent=11 // pred_fallthru
          _
        // Predicated region
        $region25: #{tpu_custom_call.1} parent=11 // pred_check
          %p297 = pneg %p183
        $region26: #{tpu_custom_call.1} parent=11 // pred_check_branch
          %299 = sbr.rel (%p297) target = $region28
        $region27: #{tpu_custom_call.1} parent=11 // pred_region
          _
        $region28: #{tpu_custom_call.1} parent=11 // pred_fallthru
          _
        // Predicated region
        $region29: #{tpu_custom_call.1} parent=11 // pred_check
          %p300 = pneg %p204
        $region30: #{tpu_custom_call.1} parent=11 // pred_check_branch
          %302 = sbr.rel (%p300) target = $region32
        $region31: #{tpu_custom_call.1} parent=11 // pred_region
          %s304 = ssub.s32 512, 512
          %305 = vsyncadd [#allocation13], %s304
          %s306 = sshll.u32 [#allocation14], 4
          %s307 = int_to_ptr.vmem [resolvable:$true] %s306
          %312 = dma.hbm_to_vmem [thread:$0]  %s6, 512, %s307, [#allocation13], 128, 128, 8
        $region32: #{tpu_custom_call.1} parent=11 // pred_fallthru
          _
        // Predicated region
        $region33: #{tpu_custom_call.1} parent=11 // pred_check
          %p313 = pneg %p225
        $region34: #{tpu_custom_call.1} parent=11 // pred_check_branch
          %315 = sbr.rel (%p313) target = $region36
        $region35: #{tpu_custom_call.1} parent=11 // pred_region
          _
        $region36: #{tpu_custom_call.1} parent=11 // pred_fallthru
          _
      $region12: #{tpu_custom_call.1} parent=5 // pred_fallthru
        _
      %p316 = scmp.lt.s32.totalorder %s24, 2
      // Predicated region
      $region37: #{tpu_custom_call.1} parent=5 // pred_check
        %p317 = pneg %p316
      $region38: #{tpu_custom_call.1} parent=5 // pred_check_branch
        %319 = sbr.rel (%p317) target = $region40
      $region39: #{tpu_custom_call.1} parent=5 // pred_region
        // Predicated region
        $region41: #{tpu_custom_call.1} parent=39 // pred_check
          %p320 = pneg %p65
        $region42: #{tpu_custom_call.1} parent=39 // pred_check_branch
          %322 = sbr.rel (%p320) target = $region44
        $region43: #{tpu_custom_call.1} parent=39 // pred_region
          %s323 = sand.u32 %s55, 1
          %s324 = scalar_lea.sflag [#allocation7], %s323
          %s325 = sand.u32 %s55, 1
          %s326 = smul.addr %s325, 8
          %s327 = scalar_lea.vmem [#allocation6], %s326
          %s329 = ssub.s32 128, 128
          %330 = vsyncadd %s324, %s329
          %s331 = sadd.s32 %s32, %s31
          %s332 = smul.addr %s331, 128
          %s333 = scalar_lea.hbm %s0, %s332
          %s335 = sshll.u32 %s327, 4
          %s336 = int_to_ptr.vmem [resolvable:$true] %s335
          %338 = dma.hbm_to_vmem [thread:$0]  %s333, 128, %s336, %s324
        $region44: #{tpu_custom_call.1} parent=39 // pred_fallthru
          _
        // Predicated region
        $region45: #{tpu_custom_call.1} parent=39 // pred_check
          %p339 = pneg %p93
        $region46: #{tpu_custom_call.1} parent=39 // pred_check_branch
          %341 = sbr.rel (%p339) target = $region48
        $region47: #{tpu_custom_call.1} parent=39 // pred_region
          %s342 = sand.u32 %s24, 1
          %s343 = scalar_lea.sflag [#allocation10], %s342
          %s344 = sand.u32 %s83, 1
          %s345 = smul.addr %s344, 8
          %s346 = scalar_lea.vmem [#allocation9], %s345
          %s348 = ssub.s32 128, 128
          %349 = vsyncadd %s343, %s348
          %s350 = sadd.s32 %s33, %s31
          %s351 = smul.addr %s350, 128
          %s352 = scalar_lea.hbm %s1, %s351
          %s354 = sshll.u32 %s346, 4
          %s355 = int_to_ptr.vmem [resolvable:$true] %s354
          %357 = dma.hbm_to_vmem [thread:$0]  %s352, 128, %s355, %s343
        $region48: #{tpu_custom_call.1} parent=39 // pred_fallthru
          _
      $region40: #{tpu_custom_call.1} parent=5 // pred_fallthru
        _
      %p358 = scmp.le.s32.totalorder 1, %s24
      %p359 = scmp.lt.s32.totalorder %s24, 3
      %p360 = pnand %p358, %p359
      %p361 = pneg %p360
      // Predicated region
      $region49: #{tpu_custom_call.1} parent=5 // pred_check
        _
      $region50: #{tpu_custom_call.1} parent=5 // pred_check_branch
        %363 = sbr.rel (%p360) target = $region52
      $region51: #{tpu_custom_call.1} parent=5 // pred_region
        %s364 = ssub.s32 %s24, 1
        %s365 = sand.u32 %s58, 1
        %s366 = scalar_lea.sflag [#allocation7], %s365
        %s367 = sand.u32 %s58, 1
        %s368 = smul.addr %s367, 8
        %s369 = scalar_lea.vmem [#allocation6], %s368
        // Predicated region
        $region53: #{tpu_custom_call.1} parent=51 // pred_check
          %p370 = pneg %p71
        $region54: #{tpu_custom_call.1} parent=51 // pred_check_branch
          %372 = sbr.rel (%p370) target = $region56
        $region55: #{tpu_custom_call.1} parent=51 // pred_region
          %373 = dma.done %s366, 128
        $region56: #{tpu_custom_call.1} parent=51 // pred_fallthru
          _
        %s374 = sand.u32 %s29, 1
        %s375 = scalar_lea.sflag [#allocation10], %s374
        %s376 = sand.u32 %s86, 1
        %s377 = smul.addr %s376, 8
        %s378 = scalar_lea.vmem [#allocation9], %s377
        // Predicated region
        $region57: #{tpu_custom_call.1} parent=51 // pred_check
          %p379 = pneg %p99
        $region58: #{tpu_custom_call.1} parent=51 // pred_check_branch
          %381 = sbr.rel (%p379) target = $region60
        $region59: #{tpu_custom_call.1} parent=51 // pred_region
          %382 = dma.done %s375, 128
        $region60: #{tpu_custom_call.1} parent=51 // pred_fallthru
          _
        // Predicated region
        $region61: #{tpu_custom_call.1} parent=51 // pred_check
          %p383 = pneg %p120
        $region62: #{tpu_custom_call.1} parent=51 // pred_check_branch
          %385 = sbr.rel (%p383) target = $region64
        $region63: #{tpu_custom_call.1} parent=51 // pred_region
          %386 = dma.done [#allocation10], 512
        $region64: #{tpu_custom_call.1} parent=51 // pred_fallthru
          _
        // Predicated region
        $region65: #{tpu_custom_call.1} parent=51 // pred_check
          %p387 = pneg %p162
        $region66: #{tpu_custom_call.1} parent=51 // pred_check_branch
          %389 = sbr.rel (%p387) target = $region68
        $region67: #{tpu_custom_call.1} parent=51 // pred_region
          %390 = dma.done [#allocation13], 512
        $region68: #{tpu_custom_call.1} parent=51 // pred_fallthru
          _
        // Predicated region
        $region69: #{tpu_custom_call.1} parent=51 // pred_check
          %p391 = pneg %p204
        $region70: #{tpu_custom_call.1} parent=51 // pred_check_branch
          %393 = sbr.rel (%p391) target = $region72
        $region71: #{tpu_custom_call.1} parent=51 // pred_region
          %394 = dma.done [#allocation13], 512
        $region72: #{tpu_custom_call.1} parent=51 // pred_fallthru
          _
        %s395 = sand.u32 %s58, 1
        %s396 = scalar_lea.sflag [#allocation7], %s395
        %s397 = sand.u32 %s58, 1
        %s398 = smul.addr %s397, 8
        %s399 = scalar_lea.vmem [#allocation6], %s398
        %p400 = pneg %p71
        %p401 = pneg %p68
        %s402 = sand.u32 %s29, 1
        %s403 = scalar_lea.sflag [#allocation10], %s402
        %s404 = sand.u32 %s86, 1
        %s405 = smul.addr %s404, 8
        %s406 = scalar_lea.vmem [#allocation9], %s405
        %p407 = pneg %p99
        %p408 = pneg %p96
        %p409 = pneg %p120
        %p410 = pneg %p117
        %p411 = pneg %p141
        %p412 = pneg %p138
        %p413 = pneg %p162
        %p414 = pneg %p159
        %p415 = pneg %p183
        %p416 = pneg %p180
        %p417 = pneg %p204
        %p418 = pneg %p201
        %p419 = pneg %p225
        %p420 = pneg %p222
        %p421 = pneg %p253
        %p422 = pneg %p250
        %s423 = sand.u32 %s240, 1
        %s424 = scalar_lea.sflag [#allocation8], %s423
        %s425 = sand.u32 %s240, 1
        %s426 = smul.addr %s425, 8
        %s427 = scalar_lea.vmem [#allocation15], %s426
        %p428 = scmp.eq.s32.totalorder %s36, 0
        // Predicated region
        $region73: #{tpu_custom_call.1} parent=51 // pred_check
          %p429 = pneg %p428
        $region74: #{tpu_custom_call.1} parent=51 // pred_check_branch
          %431 = sbr.rel (%p429) target = $region76
        $region75: #{tpu_custom_call.1} parent=51 // pred_region
          %v432 = vld [vmem:[%s369] sm:$0xff]
          %v433 = vld [vmem:[#allocation11] sm:$0xff]
          %v434 = vld [vmem:[#allocation11 + $0x8] sm:$0xff]
          %v435 = vld [vmem:[#allocation11 + $0x10] sm:$0xff]
          %v436 = vld [vmem:[#allocation11 + $0x18] sm:$0xff]
          %v437 = vld [vmem:[%s3] sm:$0x1]
          %v439 = vlaneseq
          %v440 = vshrl.u32 %v439, 7
          %v441 = vsub.s32 0, %v440
          %v442 = vrot.slane %v437, %v441
          %vm444 = vcmask 261120
          %v446 = vsel %vm444, %v432, 0
          %448 = vmatprep.subr.mxu0 0.0
          %449 = vmatpush1.msra.mxu0 0.0
          %450 = vmatprep.subr.mxu0 0.0
          %451 = vmatpush1.msra.mxu0 0.0
          %452 = vmatprep.subr.mxu0 0.0
          %453 = vmatpush1.msra.mxu0 0.0
          %454 = vmatprep.subr.mxu0 0.0
          %455 = vmatpush1.msra.mxu0 0.0
          %456 = vmatprep.subr.mxu0 0.0
          %457 = vmatpush1.msra.mxu0 0.0
          %458 = vmatprep.subr.mxu0 0.0
          %459 = vmatpush1.msra.mxu0 0.0
          %460 = vmatprep.subr.mxu0 0.0
          %461 = vmatpush1.msra.mxu0 0.0
          %462 = vmatprep.subr.mxu0 0.0
          %463 = vmatpush1.msra.mxu0 0.0
          %464 = vmatprep.subr.mxu0 0.0
          %465 = vmatpush1.msra.mxu0 0.0
          %466 = vmatprep.subr.mxu0 0.0
          %467 = vmatpush1.msra.mxu0 0.0
          %468 = vmatprep.subr.mxu0 0.0
          %469 = vmatpush1.msra.mxu0 0.0
          %470 = vmatprep.subr.mxu0 0.0
          %471 = vmatpush1.msra.mxu0 0.0
          %472 = vmatprep.subr.mxu0 0.0
          %473 = vmatpush1.msra.mxu0 %v436
          %474 = vmatprep.subr.mxu0 0.0
          %475 = vmatpush1.msra.mxu0 %v435
          %476 = vmatprep.subr.mxu0 0.0
          %477 = vmatpush1.msra.mxu0 %v434
          %478 = vmatprep.subr.mxu0 0.0
          %479 = vmatpush1.msra.mxu0 %v433
          %480 = vmatprep.subr.mxu0 0.0
          %481 = vmatpush2.msra.mxu0 0.0
          %482 = vmatprep.subr.mxu0 0.0
          %483 = vmatpush2.msra.mxu0 0.0
          %484 = vmatprep.subr.mxu0 0.0
          %485 = vmatpush2.msra.mxu0 0.0
          %486 = vmatprep.subr.mxu0 0.0
          %487 = vmatpush2.msra.mxu0 0.0
          %488 = vmatprep.subr.mxu0 0.0
          %489 = vmatpush2.msra.mxu0 0.0
          %490 = vmatprep.subr.mxu0 0.0
          %491 = vmatpush2.msra.mxu0 0.0
          %492 = vmatprep.subr.mxu0 0.0
          %493 = vmatpush2.msra.mxu0 0.0
          %494 = vmatprep.subr.mxu0 0.0
          %495 = vmatpush2.msra.mxu0 0.0
          %496 = vmatprep.subr.mxu0 0.0
          %497 = vmatpush2.msra.mxu0 0.0
          %498 = vmatprep.subr.mxu0 0.0
          %499 = vmatpush2.msra.mxu0 0.0
          %500 = vmatprep.subr.mxu0 0.0
          %501 = vmatpush2.msra.mxu0 0.0
          %502 = vmatprep.subr.mxu0 0.0
          %503 = vmatpush2.msra.mxu0 0.0
          %504 = vmatprep.subr.mxu0 0.0
          %505 = vmatpush2.msra.mxu0 0.0
          %506 = vmatprep.subr.mxu0 0.0
          %507 = vmatpush2.msra.mxu0 0.0
          %508 = vmatprep.subr.mxu0 0.0
          %509 = vmatpush2.msra.mxu0 0.0
          %510 = vmatprep.subr.mxu0 0.0
          %511 = vmatpush2.msra.mxu0 0.0
          %512 = vmatprep.mubr.f32.mxu0 0.0
          %513 = vmatmul.mubr.f32.gmra.mxu0 %v446
          %v514 = vpop.f32.mrf.mxu0
          %v515 = vadd.f32 %v442, %v514
          %v516 = vpop.f32.mrf.mxu0
          %517 = vdwg.mxu0
          %v518 = vmul.f32 %v515, 0.25
          %519 = vst [vmem:[#allocation2] sm:$0xff] %v518
          %vm520 = vcmask 7168
          %521 = vst.msk [vmem:[#allocation3] sm:$0xff] %vm520, -inf
          %522 = vst.msk [vmem:[#allocation4] sm:$0xff] %vm520, 0.0
          %523 = vst [vmem:[#allocation5] sm:$0xff] 0.0
        $region76: #{tpu_custom_call.1} parent=51 // pred_fallthru
          _
        %v524 = vld [vmem:[%s378] sm:$0xff]
        %v525 = vld [vmem:[#allocation12] sm:$0xff]
        %v526 = vld [vmem:[#allocation12 + $0x8] sm:$0xff]
        %v527 = vld [vmem:[#allocation12 + $0x10] sm:$0xff]
        %v528 = vld [vmem:[#allocation12 + $0x18] sm:$0xff]
        %v529 = vld [vmem:[%s5] sm:$0x1]
        %v531 = vlaneseq
        %v532 = vshrl.u32 %v531, 7
        %v533 = vsub.s32 0, %v532
        %v534 = vrot.slane %v529, %v533
        %vm536 = vcmask 261120
        %v538 = vsel %vm536, %v524, 0
        %540 = vmatprep.subr.mxu0 0.0
        %541 = vmatpush1.msra.mxu0 0.0
        %542 = vmatprep.subr.mxu0 0.0
        %543 = vmatpush1.msra.mxu0 0.0
        %544 = vmatprep.subr.mxu0 0.0
        %545 = vmatpush1.msra.mxu0 0.0
        %546 = vmatprep.subr.mxu0 0.0
        %547 = vmatpush1.msra.mxu0 0.0
        %548 = vmatprep.subr.mxu0 0.0
        %549 = vmatpush1.msra.mxu0 0.0
        %550 = vmatprep.subr.mxu0 0.0
        %551 = vmatpush1.msra.mxu0 0.0
        %552 = vmatprep.subr.mxu0 0.0
        %553 = vmatpush1.msra.mxu0 0.0
        %554 = vmatprep.subr.mxu0 0.0
        %555 = vmatpush1.msra.mxu0 0.0
        %556 = vmatprep.subr.mxu0 0.0
        %557 = vmatpush1.msra.mxu0 0.0
        %558 = vmatprep.subr.mxu0 0.0
        %559 = vmatpush1.msra.mxu0 0.0
        %560 = vmatprep.subr.mxu0 0.0
        %561 = vmatpush1.msra.mxu0 0.0
        %562 = vmatprep.subr.mxu0 0.0
        %563 = vmatpush1.msra.mxu0 0.0
        %564 = vmatprep.subr.mxu0 0.0
        %565 = vmatpush1.msra.mxu0 %v528
        %566 = vmatprep.subr.mxu0 0.0
        %567 = vmatpush1.msra.mxu0 %v527
        %568 = vmatprep.subr.mxu0 0.0
        %569 = vmatpush1.msra.mxu0 %v526
        %570 = vmatprep.subr.mxu0 0.0
        %571 = vmatpush1.msra.mxu0 %v525
        %572 = vmatprep.subr.mxu0 0.0
        %573 = vmatpush2.msra.mxu0 0.0
        %574 = vmatprep.subr.mxu0 0.0
        %575 = vmatpush2.msra.mxu0 0.0
        %576 = vmatprep.subr.mxu0 0.0
        %577 = vmatpush2.msra.mxu0 0.0
        %578 = vmatprep.subr.mxu0 0.0
        %579 = vmatpush2.msra.mxu0 0.0
        %580 = vmatprep.subr.mxu0 0.0
        %581 = vmatpush2.msra.mxu0 0.0
        %582 = vmatprep.subr.mxu0 0.0
        %583 = vmatpush2.msra.mxu0 0.0
        %584 = vmatprep.subr.mxu0 0.0
        %585 = vmatpush2.msra.mxu0 0.0
        %586 = vmatprep.subr.mxu0 0.0
        %587 = vmatpush2.msra.mxu0 0.0
        %588 = vmatprep.subr.mxu0 0.0
        %589 = vmatpush2.msra.mxu0 0.0
        %590 = vmatprep.subr.mxu0 0.0
        %591 = vmatpush2.msra.mxu0 0.0
        %592 = vmatprep.subr.mxu0 0.0
        %593 = vmatpush2.msra.mxu0 0.0
        %594 = vmatprep.subr.mxu0 0.0
        %595 = vmatpush2.msra.mxu0 0.0
        %596 = vmatprep.subr.mxu0 0.0
        %597 = vmatpush2.msra.mxu0 0.0
        %598 = vmatprep.subr.mxu0 0.0
        %599 = vmatpush2.msra.mxu0 0.0
        %600 = vmatprep.subr.mxu0 0.0
        %601 = vmatpush2.msra.mxu0 0.0
        %602 = vmatprep.subr.mxu0 0.0
        %603 = vmatpush2.msra.mxu0 0.0
        %604 = vmatprep.mubr.f32.mxu0 0.0
        %605 = vmatmul.mubr.f32.gmra.mxu0 %v538
        %v606 = vpop.f32.mrf.mxu0
        %v607 = vadd.f32 %v534, %v606
        %v608 = vpop.f32.mrf.mxu0
        %609 = vdwg.mxu0
        %v610 = vld [vmem:[#allocation14] sm:$0xff]
        %v611 = vld [vmem:[#allocation14 + $0x8] sm:$0xff]
        %v612 = vld [vmem:[#allocation14 + $0x10] sm:$0xff]
        %v613 = vld [vmem:[#allocation14 + $0x18] sm:$0xff]
        %v614 = vld [vmem:[%s7] sm:$0x1]
        %v616 = vlaneseq
        %v617 = vshrl.u32 %v616, 7
        %v618 = vsub.s32 0, %v617
        %v619 = vrot.slane %v614, %v618
        %621 = vmatprep.subr.mxu0 0.0
        %622 = vmatpush1.msra.mxu0 0.0
        %623 = vmatprep.subr.mxu0 0.0
        %624 = vmatpush1.msra.mxu0 0.0
        %625 = vmatprep.subr.mxu0 0.0
        %626 = vmatpush1.msra.mxu0 0.0
        %627 = vmatprep.subr.mxu0 0.0
        %628 = vmatpush1.msra.mxu0 0.0
        %629 = vmatprep.subr.mxu0 0.0
        %630 = vmatpush1.msra.mxu0 0.0
        %631 = vmatprep.subr.mxu0 0.0
        %632 = vmatpush1.msra.mxu0 0.0
        %633 = vmatprep.subr.mxu0 0.0
        %634 = vmatpush1.msra.mxu0 0.0
        %635 = vmatprep.subr.mxu0 0.0
        %636 = vmatpush1.msra.mxu0 0.0
        %637 = vmatprep.subr.mxu0 0.0
        %638 = vmatpush1.msra.mxu0 0.0
        %639 = vmatprep.subr.mxu0 0.0
        %640 = vmatpush1.msra.mxu0 0.0
        %641 = vmatprep.subr.mxu0 0.0
        %642 = vmatpush1.msra.mxu0 0.0
        %643 = vmatprep.subr.mxu0 0.0
        %644 = vmatpush1.msra.mxu0 0.0
        %645 = vmatprep.subr.mxu0 0.0
        %646 = vmatpush1.msra.mxu0 %v613
        %647 = vmatprep.subr.mxu0 0.0
        %648 = vmatpush1.msra.mxu0 %v612
        %649 = vmatprep.subr.mxu0 0.0
        %650 = vmatpush1.msra.mxu0 %v611
        %651 = vmatprep.subr.mxu0 0.0
        %652 = vmatpush1.msra.mxu0 %v610
        %653 = vmatprep.subr.mxu0 0.0
        %654 = vmatpush2.msra.mxu0 0.0
        %655 = vmatprep.subr.mxu0 0.0
        %656 = vmatpush2.msra.mxu0 0.0
        %657 = vmatprep.subr.mxu0 0.0
        %658 = vmatpush2.msra.mxu0 0.0
        %659 = vmatprep.subr.mxu0 0.0
        %660 = vmatpush2.msra.mxu0 0.0
        %661 = vmatprep.subr.mxu0 0.0
        %662 = vmatpush2.msra.mxu0 0.0
        %663 = vmatprep.subr.mxu0 0.0
        %664 = vmatpush2.msra.mxu0 0.0
        %665 = vmatprep.subr.mxu0 0.0
        %666 = vmatpush2.msra.mxu0 0.0
        %667 = vmatprep.subr.mxu0 0.0
        %668 = vmatpush2.msra.mxu0 0.0
        %669 = vmatprep.subr.mxu0 0.0
        %670 = vmatpush2.msra.mxu0 0.0
        %671 = vmatprep.subr.mxu0 0.0
        %672 = vmatpush2.msra.mxu0 0.0
        %673 = vmatprep.subr.mxu0 0.0
        %674 = vmatpush2.msra.mxu0 0.0
        %675 = vmatprep.subr.mxu0 0.0
        %676 = vmatpush2.msra.mxu0 0.0
        %677 = vmatprep.subr.mxu0 0.0
        %678 = vmatpush2.msra.mxu0 0.0
        %679 = vmatprep.subr.mxu0 0.0
        %680 = vmatpush2.msra.mxu0 0.0
        %681 = vmatprep.subr.mxu0 0.0
        %682 = vmatpush2.msra.mxu0 0.0
        %683 = vmatprep.subr.mxu0 0.0
        %684 = vmatpush2.msra.mxu0 0.0
        %685 = vmatprep.mubr.f32.mxu0 0.0
        %686 = vmatmul.mubr.f32.gmra.mxu0 %v538
        %v687 = vpop.f32.mrf.mxu0
        %v688 = vadd.f32 %v619, %v687
        %v689 = vpop.f32.mrf.mxu0
        %690 = vdwg.mxu0
        %v691 = vld [vmem:[#allocation2] sm:$0xff]
        %692 = vmatprep.subr.mxu0 0.0
        %693 = vmatpush1.xpose.msra.mxu0 0.0
        %694 = vmatprep.subr.mxu0 0.0
        %695 = vmatpush1.xpose.msra.mxu0 0.0
        %696 = vmatprep.subr.mxu0 0.0
        %697 = vmatpush1.xpose.msra.mxu0 0.0
        %698 = vmatprep.subr.mxu0 0.0
        %699 = vmatpush1.xpose.msra.mxu0 0.0
        %700 = vmatprep.subr.mxu0 0.0
        %701 = vmatpush1.xpose.msra.mxu0 0.0
        %702 = vmatprep.subr.mxu0 0.0
        %703 = vmatpush1.xpose.msra.mxu0 0.0
        %704 = vmatprep.subr.mxu0 0.0
        %705 = vmatpush1.xpose.msra.mxu0 0.0
        %706 = vmatprep.subr.mxu0 0.0
        %707 = vmatpush1.xpose.msra.mxu0 0.0
        %708 = vmatprep.subr.mxu0 0.0
        %709 = vmatpush1.xpose.msra.mxu0 0.0
        %710 = vmatprep.subr.mxu0 0.0
        %711 = vmatpush1.xpose.msra.mxu0 0.0
        %712 = vmatprep.subr.mxu0 0.0
        %713 = vmatpush1.xpose.msra.mxu0 0.0
        %714 = vmatprep.subr.mxu0 0.0
        %715 = vmatpush1.xpose.msra.mxu0 0.0
        %716 = vmatprep.subr.mxu0 0.0
        %717 = vmatpush1.xpose.msra.mxu0 0.0
        %718 = vmatprep.subr.mxu0 0.0
        %719 = vmatpush1.xpose.msra.mxu0 0.0
        %720 = vmatprep.subr.mxu0 0.0
        %721 = vmatpush1.xpose.msra.mxu0 0.0
        %722 = vmatprep.subr.mxu0 0.0
        %723 = vmatpush1.xpose.msra.mxu0 %v607
        %724 = vmatprep.subr.mxu0 0.0
        %725 = vmatpush2.xpose.msra.mxu0 0.0
        %726 = vmatprep.subr.mxu0 0.0
        %727 = vmatpush2.xpose.msra.mxu0 0.0
        %728 = vmatprep.subr.mxu0 0.0
        %729 = vmatpush2.xpose.msra.mxu0 0.0
        %730 = vmatprep.subr.mxu0 0.0
        %731 = vmatpush2.xpose.msra.mxu0 0.0
        %732 = vmatprep.subr.mxu0 0.0
        %733 = vmatpush2.xpose.msra.mxu0 0.0
        %734 = vmatprep.subr.mxu0 0.0
        %735 = vmatpush2.xpose.msra.mxu0 0.0
        %736 = vmatprep.subr.mxu0 0.0
        %737 = vmatpush2.xpose.msra.mxu0 0.0
        %738 = vmatprep.subr.mxu0 0.0
        %739 = vmatpush2.xpose.msra.mxu0 0.0
        %740 = vmatprep.subr.mxu0 0.0
        %741 = vmatpush2.xpose.msra.mxu0 0.0
        %742 = vmatprep.subr.mxu0 0.0
        %743 = vmatpush2.xpose.msra.mxu0 0.0
        %744 = vmatprep.subr.mxu0 0.0
        %745 = vmatpush2.xpose.msra.mxu0 0.0
        %746 = vmatprep.subr.mxu0 0.0
        %747 = vmatpush2.xpose.msra.mxu0 0.0
        %748 = vmatprep.subr.mxu0 0.0
        %749 = vmatpush2.xpose.msra.mxu0 0.0
        %750 = vmatprep.subr.mxu0 0.0
        %751 = vmatpush2.xpose.msra.mxu0 0.0
        %752 = vmatprep.subr.mxu0 0.0
        %753 = vmatpush2.xpose.msra.mxu0 0.0
        %754 = vmatprep.subr.mxu0 0.0
        %755 = vmatpush2.xpose.msra.mxu0 0.0
        %756 = vmatprep.mubr.f32.mxu0 0.0
        %757 = vmatmul.mubr.f32.gmra.mxu0 %v691
        %v758 = vpop.f32.mrf.mxu0
        %v759 = vadd.f32 0.0, %v758
        %v760 = vpop.f32.mrf.mxu0
        %761 = vdwg.mxu0
        %v762 = vld [vmem:[#allocation3] sm:$0xff]
        %vm763 = vcmask 64512
        %v764 = vsel %vm763, %v759, -inf
        %765 = vmax.xlane.f32.xlu0 %v764
        %v766 = vpop.xlane.xlu0 %765
        %v767 = vmax.f32 %v762, %v766
        %v768 = vsub.f32 %v762, %v767
        %v769 = vmul.f32 %v768, 1.442695
        %v770 = vpow.pop %v769
        %772 = vset.pattern.permute.xlu0 0
        %773 = vperm.xlu0 %772, %v767
        %v774 = vpop.permute.xlu0 %773
        %v776 = vsub.f32 %v759, %v774
        %v777 = vmul.f32 %v776, 1.442695
        %v778 = vpow.pop %v777
        %v779 = vld [vmem:[#allocation4] sm:$0xff]
        %v780 = vmul.f32 %v770, %v779
        %v781 = vsel %vm763, %v778, 0.0
        %782 = vadd.xlane.f32.xlu0 %v781
        %v783 = vpop.xlane.xlu0 %782
        %v784 = vadd.f32 %v780, %v783
        %vm785 = vcmask 7168
        %786 = vst.msk [vmem:[#allocation4] sm:$0xff] %vm785, %v784
        %v787 = vld [vmem:[#allocation5] sm:$0xff]
        %789 = vset.pattern.permute.xlu0 0
        %790 = vperm.xlu0 %789, %v770
        %v791 = vpop.permute.xlu0 %790
        %v793 = vmul.f32 %v791, %v787
        %v795 = vsel %vm763, %v778, 0
        %797 = vmatprep.subr.mxu0 0.0
        %798 = vmatpush1.msra.mxu0 0.0
        %799 = vmatprep.subr.mxu0 0.0
        %800 = vmatpush1.msra.mxu0 0.0
        %801 = vmatprep.subr.mxu0 0.0
        %802 = vmatpush1.msra.mxu0 0.0
        %803 = vmatprep.subr.mxu0 0.0
        %804 = vmatpush1.msra.mxu0 0.0
        %805 = vmatprep.subr.mxu0 0.0
        %806 = vmatpush1.msra.mxu0 0.0
        %807 = vmatprep.subr.mxu0 0.0
        %808 = vmatpush1.msra.mxu0 0.0
        %809 = vmatprep.subr.mxu0 0.0
        %810 = vmatpush1.msra.mxu0 0.0
        %811 = vmatprep.subr.mxu0 0.0
        %812 = vmatpush1.msra.mxu0 0.0
        %813 = vmatprep.subr.mxu0 0.0
        %814 = vmatpush1.msra.mxu0 0.0
        %815 = vmatprep.subr.mxu0 0.0
        %816 = vmatpush1.msra.mxu0 0.0
        %817 = vmatprep.subr.mxu0 0.0
        %818 = vmatpush1.msra.mxu0 0.0
        %819 = vmatprep.subr.mxu0 0.0
        %820 = vmatpush1.msra.mxu0 0.0
        %821 = vmatprep.subr.mxu0 0.0
        %822 = vmatpush1.msra.mxu0 0.0
        %823 = vmatprep.subr.mxu0 0.0
        %824 = vmatpush1.msra.mxu0 0.0
        %825 = vmatprep.subr.mxu0 0.0
        %826 = vmatpush1.msra.mxu0 0.0
        %827 = vmatprep.subr.mxu0 0.0
        %828 = vmatpush1.msra.mxu0 %v688
        %829 = vmatprep.subr.mxu0 0.0
        %830 = vmatpush2.msra.mxu0 0.0
        %831 = vmatprep.subr.mxu0 0.0
        %832 = vmatpush2.msra.mxu0 0.0
        %833 = vmatprep.subr.mxu0 0.0
        %834 = vmatpush2.msra.mxu0 0.0
        %835 = vmatprep.subr.mxu0 0.0
        %836 = vmatpush2.msra.mxu0 0.0
        %837 = vmatprep.subr.mxu0 0.0
        %838 = vmatpush2.msra.mxu0 0.0
        %839 = vmatprep.subr.mxu0 0.0
        %840 = vmatpush2.msra.mxu0 0.0
        %841 = vmatprep.subr.mxu0 0.0
        %842 = vmatpush2.msra.mxu0 0.0
        %843 = vmatprep.subr.mxu0 0.0
        %844 = vmatpush2.msra.mxu0 0.0
        %845 = vmatprep.subr.mxu0 0.0
        %846 = vmatpush2.msra.mxu0 0.0
        %847 = vmatprep.subr.mxu0 0.0
        %848 = vmatpush2.msra.mxu0 0.0
        %849 = vmatprep.subr.mxu0 0.0
        %850 = vmatpush2.msra.mxu0 0.0
        %851 = vmatprep.subr.mxu0 0.0
        %852 = vmatpush2.msra.mxu0 0.0
        %853 = vmatprep.subr.mxu0 0.0
        %854 = vmatpush2.msra.mxu0 0.0
        %855 = vmatprep.subr.mxu0 0.0
        %856 = vmatpush2.msra.mxu0 0.0
        %857 = vmatprep.subr.mxu0 0.0
        %858 = vmatpush2.msra.mxu0 0.0
        %859 = vmatprep.subr.mxu0 0.0
        %860 = vmatpush2.msra.mxu0 0.0
        %861 = vmatprep.mubr.f32.mxu0 0.0
        %862 = vmatmul.mubr.f32.gmra.mxu0 %v795
        %v863 = vpop.f32.mrf.mxu0
        %v864 = vadd.f32 0.0, %v863
        %v865 = vpop.f32.mrf.mxu0
        %866 = vdwg.mxu0
        %v867 = vadd.f32 %v793, %v864
        %868 = vst [vmem:[#allocation5] sm:$0xff] %v867
        %869 = vst.msk [vmem:[#allocation3] sm:$0xff] %vm785, %v767
        // Predicated region
        $region77: #{tpu_custom_call.1} parent=51 // pred_check
          %p870 = pneg %p428
        $region78: #{tpu_custom_call.1} parent=51 // pred_check_branch
          %872 = sbr.rel (%p870) target = $region80
        $region79: #{tpu_custom_call.1} parent=51 // pred_region
          %v873 = vld [vmem:[#allocation4] sm:$0xff]
          %v874 = vrcp.pop %v873
          %v875 = vld [vmem:[#allocation5] sm:$0xff]
          %877 = vset.pattern.permute.xlu0 0
          %878 = vperm.xlu0 %877, %v874
          %v879 = vpop.permute.xlu0 %878
          %v881 = vmul.f32 %v875, %v879
          %882 = vst [vmem:[%s427] sm:$0xff] %v881
        $region80: #{tpu_custom_call.1} parent=51 // pred_fallthru
          _
        %s883 = sand.u32 %s240, 1
        %s884 = scalar_lea.sflag [#allocation8], %s883
        %s885 = sand.u32 %s240, 1
        %s886 = smul.addr %s885, 8
        %s887 = scalar_lea.vmem [#allocation15], %s886
        // Predicated region
        $region81: #{tpu_custom_call.1} parent=51 // pred_check
          %p888 = pneg %p250
        $region82: #{tpu_custom_call.1} parent=51 // pred_check_branch
          %890 = sbr.rel (%p888) target = $region84
        $region83: #{tpu_custom_call.1} parent=51 // pred_region
          %s892 = ssub.s32 128, 128
          %893 = vsyncadd %s884, %s892
          %s894 = sadd.s32 %s35, %s34
          %s895 = smul.addr %s894, 128
          %s896 = scalar_lea.hbm %s8, %s895
          %s898 = sshll.u32 %s887, 4
          %s899 = int_to_ptr.vmem [resolvable:$true] %s898
          %901 = dma.vmem_to_hbm [thread:$0]  %s899, 128, %s896, %s884
        $region84: #{tpu_custom_call.1} parent=51 // pred_fallthru
          _
      $region52: #{tpu_custom_call.1} parent=5 // pred_fallthru
        _
      %p902 = scmp.le.s32.totalorder 2, %s24
      // Predicated region
      $region85: #{tpu_custom_call.1} parent=5 // pred_check
        %p903 = pneg %p902
      $region86: #{tpu_custom_call.1} parent=5 // pred_check_branch
        %905 = sbr.rel (%p903) target = $region88
      $region87: #{tpu_custom_call.1} parent=5 // pred_region
        %s906 = ssub.s32 %s24, 2
        // Predicated region
        $region89: #{tpu_custom_call.1} parent=87 // pred_check
          %p907 = pneg %p256
        $region90: #{tpu_custom_call.1} parent=87 // pred_check_branch
          %909 = sbr.rel (%p907) target = $region92
        $region91: #{tpu_custom_call.1} parent=87 // pred_region
          %s910 = sand.u32 %s241, 1
          %s911 = scalar_lea.sflag [#allocation8], %s910
          %s912 = sand.u32 %s241, 1
          %s913 = smul.addr %s912, 8
          %s914 = scalar_lea.vmem [#allocation15], %s913
          %915 = dma.done %s911, 128
        $region92: #{tpu_custom_call.1} parent=87 // pred_fallthru
          _
      $region88: #{tpu_custom_call.1} parent=5 // pred_fallthru
        _
    $region6: #{tpu_custom_call.1} parent=1 // loop_footer
      %s28 = sadd.s32 1, %s24
    $region7: #{tpu_custom_call.1} parent=1 // loop_footer_branch
      %23 = sbr.rel target = $region3
    $region8: #{tpu_custom_call.1} parent=1 // loop_exit
      _
    %916 = vsyncpa [#allocation7], 1
    %s917 = scalar_lea.sflag [#allocation7], 1
    %918 = vsyncpa %s917, 1
    %919 = vsyncpa [#allocation10], 1
    %s920 = scalar_lea.sflag [#allocation10], 1
    %921 = vsyncpa %s920, 1
    %922 = vsyncpa [#allocation13], 1
    %923 = vsyncpa [#allocation8], 1
    %s924 = scalar_lea.sflag [#allocation8], 1
    %925 = vsyncpa %s924, 1

</llo_original>
